<compile_context>
chip_gen: v7x
topology: tpu7x:2x2x1
jax: 0.10.0
libtpu: 0.0.40
codegen_flags: <defaults>
</compile_context>

<pallas_src>
import functools

import jax
import jax.numpy as jnp
from jax.experimental import pallas as pl
from jax.experimental.pallas import tpu as pltpu

LANE = 128     # lane width: output last dim padded to a multiple of this
SUBLANE = 8    # sublane width: batch tile kept a multiple of this


def _round_up(n, m):
    return ((n + m - 1) // m) * m


def proj_kernel(scale_ref, x_ref, wT_ref, bias_ref, o_ref):
    # scale_ref: (1,)            SMEM f32   scalar "weight" parameter
    # x_ref:     (TB, D_in)      VMEM       batch tile (input dtype)
    # wT_ref:    (D_in, D_out_p) VMEM       pre-transposed, padded projection
    # bias_ref:  (1, D_out_p)    VMEM f32   padded bias
    # o_ref:     (TB, D_out_p)   VMEM       output tile
    x = x_ref[...]
    xf = x.astype(jnp.float32)

    # Row-wise L2 norm in f32 (VPU mul + XLU reduce + EUP rsqrt — all off the
    # MXU critical path). Matches PyTorch x / x.norm(): zero rows give inf/NaN.
    sq = jnp.sum(xf * xf, axis=-1, keepdims=True)
    inv = jax.lax.rsqrt(sq) * scale_ref[0]          # fold scalar gain in here

    # Cast back to the input dtype so bf16 inputs use the native bf16 MXU path;
    # accumulation stays f32 via preferred_element_type.
    x_n = (xf * inv).astype(x.dtype)

    out = jnp.dot(x_n, wT_ref[...], preferred_element_type=jnp.float32)
    out = out + bias_ref[...]
    o_ref[...] = out.astype(o_ref.dtype)


def prepare_proj_params(proj, bias):
    """One-time parameter prep (outside the per-call path).

    proj: (D_out, D_in) fixed orthogonal matrix (PyTorch linear layout).
    bias: (D_out,)
    Returns (wT, bias_p) with wT: (D_in, D_out_p), bias_p: (1, D_out_p) f32,
    where D_out_p = round_up(D_out, 128) and the pad columns are zero.
    """
    d_out, d_in = proj.shape
    d_out_p = _round_up(d_out, LANE)
    wT = jnp.zeros((d_in, d_out_p), proj.dtype).at[:, :d_out].set(proj.T)
    bias_p = jnp.zeros((1, d_out_p), jnp.float32).at[:, :d_out].set(
        bias.astype(jnp.float32))
    return wT, bias_p


@functools.partial(jax.jit, static_argnames=("d_out", "max_tb"))
def proj_forward(x, wT, bias_p, scale, *, d_out, max_tb=512):
    """x: (B, D_in); wT: (D_in, D_out_p); bias_p: (1, D_out_p) f32; scale: scalar."""
    b, d_in = x.shape
    d_out_p = wT.shape[1]

    # Batch tile: multiple of 8 sublanes, capped so double-buffered tiles stay
    # comfortably inside v7x's smaller (64 MiB physical / 32 MiB scoped) VMEM.
    tb = min(max_tb, _round_up(b, SUBLANE))
    grid = (pl.cdiv(b, tb),)

    wT = wT.astype(x.dtype)                              # bf16 fast path if x is bf16
    scale1 = jnp.asarray(scale, jnp.float32).reshape(1)  # keep the gain in f32 (SMEM)

    out_p = pl.pallas_call(
        proj_kernel,
        out_shape=jax.ShapeDtypeStruct((b, d_out_p), x.dtype),
        grid=grid,
        in_specs=[
            pl.BlockSpec(memory_space=pltpu.MemorySpace.SMEM),    # scale (scalar)
            pl.BlockSpec((tb, d_in), lambda i: (i, 0)),           # x batch tile
            pl.BlockSpec((d_in, d_out_p), lambda i: (0, 0)),      # wT resident
            pl.BlockSpec((1, d_out_p), lambda i: (0, 0)),         # bias resident
        ],
        out_specs=pl.BlockSpec((tb, d_out_p), lambda i: (i, 0)),
        compiler_params=pltpu.CompilerParams(
            dimension_semantics=("parallel",),   # independent per-row: megacore OK
        ),
    )(scale1, x, wT, bias_p)

    # Drop the lane padding on the output feature dim.
    return out_p[:, :d_out]


if __name__ == "__main__":
    input_size = 32
    output_size = 64
    batch = 8
    init_scale = 10.0

    key = jax.random.PRNGKey(0)
    kx, kproj = jax.random.split(key)

    # Deterministic parameter init (mirrors Proj.__init__ shapes):
    #   weight: scalar filled with init_scale
    #   bias:   zeros(output_size)
    #   proj:   fixed orthogonal (output_size, input_size), not trained
    scale = jnp.float32(init_scale)
    bias = jnp.zeros((output_size,), jnp.float32)
    proj = jax.nn.initializers.orthogonal()(kproj, (output_size, input_size),
                                            jnp.float32)

    x = jax.random.normal(kx, (batch, input_size), jnp.float32)

    # One-time glue: pre-transpose + pad the fixed projection / bias.
    wT, bias_p = prepare_proj_params(proj, bias)

    out = proj_forward(x, wT, bias_p, scale, d_out=output_size)
    out = jax.block_until_ready(out)

    # Reference check in plain JAX (matches the PyTorch forward).
    x_n = x / jnp.linalg.norm(x, axis=-1, keepdims=True)
    ref = x_n @ proj.T * scale + bias.reshape(1, -1)
    assert out.shape == (batch, output_size)
    assert jnp.allclose(out, ref, atol=1e-4, rtol=1e-4)

    print("KERNEL_OK")
</pallas_src>

<mosaic_0001>
module attributes {stable_mosaic.version = 11 : i64} {
  func.func @proj_kernel(%arg0: i32, %arg1: memref<1xf32, #tpu.memory_space<smem>>, %arg2: memref<8x32xf32, #tpu.memory_space<vmem>>, %arg3: memref<32x128xf32, #tpu.memory_space<vmem>>, %arg4: memref<1x128xf32, #tpu.memory_space<vmem>>, %arg5: memref<8x128xf32, #tpu.memory_space<vmem>>) attributes {dimension_semantics = [#tpu.dimension_semantics<parallel>], iteration_bounds = array<i64: 1>, scalar_prefetch = 0 : i64, scratch_operands = 0 : i64, tpu.core_type = #tpu.core_type<tc>, window_params = [{transform_indices = @transform_0, window_bounds = array<i64: 1>}, {transform_indices = @transform_1, window_bounds = array<i64: 8, 32>}, {pipeline_mode = #tpu.pipeline_mode<synchronous>, transform_indices = @transform_2, window_bounds = array<i64: 32, 128>}, {pipeline_mode = #tpu.pipeline_mode<synchronous>, transform_indices = @transform_3, window_bounds = array<i64: 1, 128>}, {transform_indices = @transform_4, window_bounds = array<i64: 8, 128>}]} {
    %c0 = arith.constant 0 : index
    %c0_0 = arith.constant 0 : index
    %0 = vector.load %arg2[%c0, %c0_0] : memref<8x32xf32, #tpu.memory_space<vmem>>, vector<8x32xf32>
    %1 = arith.mulf %0, %0 : vector<8x32xf32>
    %cst = arith.constant dense<0.000000e+00> : vector<8xf32>
    %2 = vector.multi_reduction <add>, %1, %cst [1] : vector<8x32xf32> to vector<8xf32>
    %3 = vector.shape_cast %2 : vector<8xf32> to vector<8x1xf32>
    %4 = math.rsqrt %3 : vector<8x1xf32>
    %c0_1 = arith.constant 0 : index
    %5 = memref.load %arg1[%c0_1] : memref<1xf32, #tpu.memory_space<smem>>
    %6 = vector.broadcast %5 : f32 to vector<8x1xf32>
    %7 = arith.mulf %4, %6 : vector<8x1xf32>
    %8 = vector.broadcast %7 : vector<8x1xf32> to vector<8x32xf32>
    %9 = arith.mulf %0, %8 : vector<8x32xf32>
    %c0_2 = arith.constant 0 : index
    %c0_3 = arith.constant 0 : index
    %10 = vector.load %arg3[%c0_2, %c0_3] : memref<32x128xf32, #tpu.memory_space<vmem>>, vector<32x128xf32>
    %cst_4 = arith.constant dense<0.000000e+00> : vector<8x128xf32>
    %11 = tpu.matmul %9, %10, %cst_4 {dimension_numbers = #tpu.dot_dimension_numbers<[1], [0], [0], [1], [0, 0, 1, 1], [], []>} : vector<8x32xf32>, vector<32x128xf32>, vector<8x128xf32> -> vector<8x128xf32>
    %c0_5 = arith.constant 0 : index
    %c0_6 = arith.constant 0 : index
    %12 = vector.load %arg4[%c0_5, %c0_6] : memref<1x128xf32, #tpu.memory_space<vmem>>, vector<1x128xf32>
    %13 = vector.broadcast %12 : vector<1x128xf32> to vector<8x128xf32>
    %14 = arith.addf %11, %13 : vector<8x128xf32>
    %c0_7 = arith.constant 0 : index
    %c0_8 = arith.constant 0 : index
    %15 = vector.load %arg5[%c0_7, %c0_8] : memref<8x128xf32, #tpu.memory_space<vmem>>, vector<8x128xf32>
    tpu.vector_store %arg5[%c0_7, %c0_8], %14 {strides = array<i32>} : memref<8x128xf32, #tpu.memory_space<vmem>>, vector<8x128xf32>,
    return
  }
  func.func @transform_0(%arg0: i32) -> i32 {
    %c0_i32 = arith.constant 0 : i32
    %c0_i32_0 = arith.constant 0 : i32
    return %c0_i32 : i32
  }
  func.func @transform_1(%arg0: i32) -> (i32, i32) {
    %c0_i32 = arith.constant 0 : i32
    %c0_i32_0 = arith.constant 0 : i32
    return %arg0, %c0_i32 : i32, i32
  }
  func.func @transform_2(%arg0: i32) -> (i32, i32) {
    %c0_i32 = arith.constant 0 : i32
    %c0_i32_0 = arith.constant 0 : i32
    %c0_i32_1 = arith.constant 0 : i32
    return %c0_i32, %c0_i32_0 : i32, i32
  }
  func.func @transform_3(%arg0: i32) -> (i32, i32) {
    %c0_i32 = arith.constant 0 : i32
    %c0_i32_0 = arith.constant 0 : i32
    %c0_i32_1 = arith.constant 0 : i32
    return %c0_i32, %c0_i32_0 : i32, i32
  }
  func.func @transform_4(%arg0: i32) -> (i32, i32) {
    %c0_i32 = arith.constant 0 : i32
    %c0_i32_0 = arith.constant 0 : i32
    return %arg0, %c0_i32 : i32, i32
  }
}

</mosaic_0001>

<llo_original>
// kernel: proj_forward.1
$region0: #{proj_forward.1}
  #allocation0 [shape = 'u32[]', space=smem, size = 0x4, offset = 0x4, fixed_abs, tag = 'smem constant byte address 0x4 - core index']
  #allocation1 [shape = 'u32[144,128]{1,0:T(1,128)}', space=vmem, size = 0x12000, scoped, tag = 'internal scratch']
  #allocation2 [shape = 'f32[1]{0:T(128)S(6)}', space=smem, size = 0x200, scoped, tag = 'scoped memory for proj_forward.1']
  %s0 = inlined_call_operand.<no memory space> [shape: f32[1], index: 0, kind: input, shape index: {}]
  %s1 = inlined_call_operand.hbm [shape: f32[8,32], index: 1, kind: input, shape index: {}]
  %s2 = inlined_call_operand.hbm [shape: f32[32,128], index: 2, kind: input, shape index: {}]
  %s3 = inlined_call_operand.vmem [shape: f32[1,128], index: 3, kind: input, shape index: {}]
  %s4 = inlined_call_operand.hbm [shape: f32[8,128], index: 4, kind: output, shape index: {}]
  %s5 = sld [smem:[#allocation0]]
  $region34: #{proj_forward.1} parent=0
    _
  %s7 = ssub.s32 1, %s5
  %s8 = scalar_select 0, %s7, %s5
  %9 = sst [smem:[#allocation2]] %s0
  $region1: #{proj_forward.1} parent=0
    #allocation3 [shape = 'u8[4096]{0}', space=vmem, size = 0x1000, scoped, tag = 'input window, operand 1, single buffered']
    #allocation4 [shape = 's32[1]{0}', space=sflag, size = 0x4, scoped, tag = 'scoped memory for proj_forward.1']
    #allocation5 [shape = 's32[1]{0}', space=sflag, size = 0x4, scoped, tag = 'scoped memory for proj_forward.1']
    #allocation6 [shape = 'u8[16384]{0}', space=vmem, size = 0x4000, scoped, tag = 'input window, operand 2, single buffered']
    #allocation7 [shape = 's32[1]{0}', space=sflag, size = 0x4, scoped, tag = 'scoped memory for proj_forward.1']
    #allocation8 [shape = 'u8[4096]{0}', space=vmem, size = 0x1000, scoped, tag = 'output window, operand 0, single buffered']
    %10 = vsyncpa [#allocation4], 0
    %11 = vsyncpa [#allocation7], 0
    %12 = vsyncpa [#allocation5], 0
    // Predicated region
    $region2: #{proj_forward.1} parent=1 // pred_check
      _
    $region3: #{proj_forward.1} parent=1 // pred_check_branch
      %14 = sbr.rel (0) target = $region5
    $region4: #{proj_forward.1} parent=1 // pred_region
      _
    $region5: #{proj_forward.1} parent=1 // pred_fallthru
      _
    // Predicated region
    $region6: #{proj_forward.1} parent=1 // pred_check
      _
    $region7: #{proj_forward.1} parent=1 // pred_check_branch
      %16 = sbr.rel (0) target = $region9
    $region8: #{proj_forward.1} parent=1 // pred_region
      %s18 = ssub.s32 128, 128
      %19 = vsyncadd [#allocation4], %s18
      %s21 = sshll.u32 [#allocation3], 4
      %s22 = int_to_ptr.vmem [resolvable:$true] %s21
      %24 = dma.hbm_to_vmem [thread:$0]  %s1, 128, %s22, [#allocation4]
    $region9: #{proj_forward.1} parent=1 // pred_fallthru
      _
    // Predicated region
    $region10: #{proj_forward.1} parent=1 // pred_check
      _
    $region11: #{proj_forward.1} parent=1 // pred_check_branch
      %26 = sbr.rel (0) target = $region13
    $region12: #{proj_forward.1} parent=1 // pred_region
      %s28 = ssub.s32 512, 512
      %29 = vsyncadd [#allocation7], %s28
      %s30 = sshll.u32 [#allocation6], 4
      %s31 = int_to_ptr.vmem [resolvable:$true] %s30
      %36 = dma.hbm_to_vmem [thread:$0]  %s2, 512, %s31, [#allocation7], 128, 128, 8
    $region13: #{proj_forward.1} parent=1 // pred_fallthru
      _
    // Predicated region
    $region14: #{proj_forward.1} parent=1 // pred_check
      _
    $region15: #{proj_forward.1} parent=1 // pred_check_branch
      %38 = sbr.rel (0) target = $region17
    $region16: #{proj_forward.1} parent=1 // pred_region
      _
    $region17: #{proj_forward.1} parent=1 // pred_fallthru
      _
    // Predicated region
    $region18: #{proj_forward.1} parent=1 // pred_check
      _
    $region19: #{proj_forward.1} parent=1 // pred_check_branch
      %40 = sbr.rel (0) target = $region21
    $region20: #{proj_forward.1} parent=1 // pred_region
      %41 = dma.done [#allocation4], 128
    $region21: #{proj_forward.1} parent=1 // pred_fallthru
      _
    // Predicated region
    $region22: #{proj_forward.1} parent=1 // pred_check
      _
    $region23: #{proj_forward.1} parent=1 // pred_check_branch
      %43 = sbr.rel (0) target = $region25
    $region24: #{proj_forward.1} parent=1 // pred_region
      %44 = dma.done [#allocation7], 512
    $region25: #{proj_forward.1} parent=1 // pred_fallthru
      _
    %v45 = vld [vmem:[#allocation3] sm:$0xff]
    %v46 = vmul.f32 %v45, %v45
    %vm47 = vcmask 261120
    %v48 = vsel %vm47, %v46, 0.0
    %49 = vadd.xlane.f32.xlu0 %v48
    %v50 = vpop.xlane.xlu0 %49
    %v51 = vrsqrt.pop %v50
    %s52 = sld [smem:[#allocation2]]
    %v53 = vstv %s52
    %v54 = vmul.f32 %v51, %v53
    %v55 = vmul.f32 %v45, %v54
    %v56 = vld [vmem:[#allocation6] sm:$0xff]
    %v57 = vld [vmem:[#allocation6 + $0x8] sm:$0xff]
    %v58 = vld [vmem:[#allocation6 + $0x10] sm:$0xff]
    %v59 = vld [vmem:[#allocation6 + $0x18] sm:$0xff]
    %v60 = vld [vmem:[%s3] sm:$0x1]
    %v62 = vlaneseq
    %v63 = vshrl.u32 %v62, 7
    %v64 = vsub.s32 0, %v63
    %v65 = vrot.slane %v60, %v64
    %v68 = vsel %vm47, %v55, 0
    %70 = vmatprep.subr.mxu0 0.0
    %71 = vmatpush1.msra.mxu0 %v56
    %72 = vmatprep.subr.mxu0 0.0
    %73 = vmatpush1.msra.mxu0 %v57
    %74 = vmatprep.subr.mxu0 0.0
    %75 = vmatpush1.msra.mxu0 %v58
    %76 = vmatprep.subr.mxu0 0.0
    %77 = vmatpush1.msra.mxu0 %v59
    %78 = vmatprep.subr.mxu0 0.0
    %79 = vmatpush1.msra.mxu0 0.0
    %80 = vmatprep.subr.mxu0 0.0
    %81 = vmatpush1.msra.mxu0 0.0
    %82 = vmatprep.subr.mxu0 0.0
    %83 = vmatpush1.msra.mxu0 0.0
    %84 = vmatprep.subr.mxu0 0.0
    %85 = vmatpush1.msra.mxu0 0.0
    %86 = vmatprep.subr.mxu0 0.0
    %87 = vmatpush1.msra.mxu0 0.0
    %88 = vmatprep.subr.mxu0 0.0
    %89 = vmatpush1.msra.mxu0 0.0
    %90 = vmatprep.subr.mxu0 0.0
    %91 = vmatpush1.msra.mxu0 0.0
    %92 = vmatprep.subr.mxu0 0.0
    %93 = vmatpush1.msra.mxu0 0.0
    %94 = vmatprep.subr.mxu0 0.0
    %95 = vmatpush1.msra.mxu0 0.0
    %96 = vmatprep.subr.mxu0 0.0
    %97 = vmatpush1.msra.mxu0 0.0
    %98 = vmatprep.subr.mxu0 0.0
    %99 = vmatpush1.msra.mxu0 0.0
    %100 = vmatprep.subr.mxu0 0.0
    %101 = vmatpush1.msra.mxu0 0.0
    %102 = vmatprep.subr.mxu0 0.0
    %103 = vmatpush1.msra.mxu0 0.0
    %104 = vmatprep.subr.mxu0 0.0
    %105 = vmatpush1.msra.mxu0 0.0
    %106 = vmatprep.subr.mxu0 0.0
    %107 = vmatpush1.msra.mxu0 0.0
    %108 = vmatprep.subr.mxu0 0.0
    %109 = vmatpush1.msra.mxu0 0.0
    %110 = vmatprep.subr.mxu0 0.0
    %111 = vmatpush1.msra.mxu0 0.0
    %112 = vmatprep.subr.mxu0 0.0
    %113 = vmatpush1.msra.mxu0 0.0
    %114 = vmatprep.subr.mxu0 0.0
    %115 = vmatpush1.msra.mxu0 0.0
    %116 = vmatprep.subr.mxu0 0.0
    %117 = vmatpush1.msra.mxu0 0.0
    %118 = vmatprep.subr.mxu0 0.0
    %119 = vmatpush1.msra.mxu0 0.0
    %120 = vmatprep.subr.mxu0 0.0
    %121 = vmatpush1.msra.mxu0 0.0
    %122 = vmatprep.subr.mxu0 0.0
    %123 = vmatpush1.msra.mxu0 0.0
    %124 = vmatprep.subr.mxu0 0.0
    %125 = vmatpush1.msra.mxu0 0.0
    %126 = vmatprep.subr.mxu0 0.0
    %127 = vmatpush1.msra.mxu0 0.0
    %128 = vmatprep.subr.mxu0 0.0
    %129 = vmatpush1.msra.mxu0 0.0
    %130 = vmatprep.subr.mxu0 0.0
    %131 = vmatpush1.msra.mxu0 0.0
    %132 = vmatprep.subr.mxu0 0.0
    %133 = vmatpush1.msra.mxu0 0.0
    %134 = vmatprep.mubr.f32.mxu0 0.0
    %135 = vmatmul.mubr.f32.gmra.mrb[0].mxu0 %v68
    %v136 = vpop.f32.mrb[0].mxu0
    %v137 = vadd.f32 %v65, %v136
    %v138 = vpop.f32.mrb[0].mxu0
    %139 = vdwg.mxu0
    %140 = vst [vmem:[#allocation8] sm:$0xff] %v137
    // Predicated region
    $region26: #{proj_forward.1} parent=1 // pred_check
      _
    $region27: #{proj_forward.1} parent=1 // pred_check_branch
      %142 = sbr.rel (0) target = $region29
    $region28: #{proj_forward.1} parent=1 // pred_region
      %s144 = ssub.s32 128, 128
      %145 = vsyncadd [#allocation5], %s144
      %s147 = sshll.u32 [#allocation8], 4
      %s148 = int_to_ptr.vmem [resolvable:$true] %s147
      %150 = dma.vmem_to_hbm [thread:$0]  %s148, 128, %s4, [#allocation5]
    $region29: #{proj_forward.1} parent=1 // pred_fallthru
      _
    // Predicated region
    $region30: #{proj_forward.1} parent=1 // pred_check
      _
    $region31: #{proj_forward.1} parent=1 // pred_check_branch
      %152 = sbr.rel (0) target = $region33
    $region32: #{proj_forward.1} parent=1 // pred_region
      %153 = dma.done [#allocation5], 128
    $region33: #{proj_forward.1} parent=1 // pred_fallthru
      _
    %154 = vsyncpa [#allocation4], 1
    %155 = vsyncpa [#allocation7], 1
    %156 = vsyncpa [#allocation5], 1

</llo_original>
